<compile_context>
chip_gen: v7x
topology: tpu7x:2x2x1
jax: 0.10.0
libtpu: 0.0.40
codegen_flags: <defaults>
</compile_context>

<pallas_src>
from functools import partial

import jax
import jax.numpy as jnp
from jax.experimental import pallas as pl
from jax.experimental.pallas import tpu as pltpu

EPS = 1e-5
LANE = 128   # every layer's output width (32 / 64 / 8) fits one 128-lane tile
KMAX = 64    # max fan_in across layers (= hidden*2); bf16 sublane-tile aligned


# ----------------------------------------------------------------------------
# Kernel: fused 4-layer MLP (+ training-mode BN + ReLU), one grid step = one
# forward pass over a (Bp, F) batch.  Weights / vectors are VMEM-resident
# across the whole grid (constant index_map).
# ----------------------------------------------------------------------------
def mlp_kernel(x_ref, w_ref, v_ref, o_ref, *, apply_bn: bool, batch: int,
               f_in: int, k_max: int):
    """
    x_ref : (1, Bp, F)       f32   raw input for this step
    w_ref : (4, KMAX, 128)   bf16  zero-padded weights, pre-transposed (in, out)
    v_ref : (16, 128)        f32   rows: b1,g1,be1, b2,g2,be2, b3,g3,be3, b4, pad
    o_ref : (1, Bp, 128)     f32   lane-dense output slab
    """
    inv_b = 1.0 / float(batch)
    v = v_ref[...]                                   # (16, 128) f32

    def bn(h, g, beta):
        if not apply_bn:                             # static Python branch
            return h
        hb = h[:batch]                               # stats over real rows only
        mean = jnp.sum(hb, axis=0, keepdims=True) * inv_b
        diff = hb - mean
        var = jnp.sum(diff * diff, axis=0, keepdims=True) * inv_b   # biased
        return (h - mean) * jax.lax.rsqrt(var + EPS) * g + beta

    def hidden_layer(lhs_bf16, rhs_bf16, b_row, g_row, beta_row):
        h = jnp.dot(lhs_bf16, rhs_bf16, preferred_element_type=jnp.float32)
        if not apply_bn:
            # linear bias only matters when BN is skipped (BN cancels constants)
            h = h + v[b_row:b_row + 1, :]
        h = bn(h, v[g_row:g_row + 1, :], v[beta_row:beta_row + 1, :])
        return jnp.maximum(h, 0.0)

    x = x_ref[0].astype(jnp.bfloat16)                # (Bp, F) bf16

    # layer1 + bn1 + relu : contract over the real input width F
    h = hidden_layer(x, w_ref[0][:f_in, :], 0, 1, 2)
    # layer2 + bn2 + relu : 64-wide contraction (padded lanes/rows are zero)
    h = hidden_layer(h[:, :k_max].astype(jnp.bfloat16), w_ref[1], 3, 4, 5)
    # layer3 + bn3 + relu
    h = hidden_layer(h[:, :k_max].astype(jnp.bfloat16), w_ref[2], 6, 7, 8)
    # layer4: bias always, no BN, no ReLU; lane-dense store
    o_ref[0] = (jnp.dot(h[:, :k_max].astype(jnp.bfloat16), w_ref[3],
                        preferred_element_type=jnp.float32)
                + v[9:10, :])


# ----------------------------------------------------------------------------
# Parameter packing (done once, offline w.r.t. the forward pass)
# ----------------------------------------------------------------------------
def pack_params(params):
    """Pack 14 small tensors into two lane-dense slabs (bf16 W, f32 vectors)."""
    def pad_w(w):
        fi, fo = w.shape
        assert fi <= KMAX and fo <= LANE, "packing assumes fan_in<=64, fan_out<=128"
        return jnp.zeros((KMAX, LANE), jnp.float32).at[:fi, :fo].set(w)

    w_slab = jnp.stack([pad_w(params["w1"]), pad_w(params["w2"]),
                        pad_w(params["w3"]), pad_w(params["w4"])]
                       ).astype(jnp.bfloat16)            # (4, 64, 128) bf16

    def pad_row(vec):
        vec = vec.reshape(-1)
        return jnp.zeros((LANE,), jnp.float32).at[:vec.shape[0]].set(vec)

    rows = [params["b1"], params["g1"], params["beta1"],
            params["b2"], params["g2"], params["beta2"],
            params["b3"], params["g3"], params["beta3"],
            params["b4"]]
    v_slab = jnp.stack([pad_row(r) for r in rows]
                       + [jnp.zeros((LANE,), jnp.float32)] * (16 - len(rows)))
    return w_slab, v_slab                                 # (16, 128) f32


# ----------------------------------------------------------------------------
# Forward wrapper
# ----------------------------------------------------------------------------
def improved_body_motion_forward(x, w_slab, v_slab, out_dim):
    """x: (T, B, F) or (B, F) f32 -> (T, B, out_dim) or (B, out_dim) f32.

    All T steps run in a single pallas_call; weights are DMA'd once.
    """
    squeeze = (x.ndim == 2)
    if squeeze:
        x = x[None]
    T, B, F = x.shape
    apply_bn = B > 1                      # mirrors `if x.shape[0] > 1:` (static)
    k_max = w_slab.shape[1]

    # Round batch up to the f32 sublane tile (8); BN stats still use real B.
    Bp = ((B + 7) // 8) * 8
    if Bp != B:
        x = jnp.pad(x, ((0, 0), (0, Bp - B), (0, 0)))

    cost = pl.CostEstimate(
        flops=2 * T * Bp * (F * LANE + 3 * k_max * LANE),
        transcendentals=0,
        bytes_accessed=(x.size * 4 + w_slab.size * 2 + v_slab.size * 4
                        + T * Bp * LANE * 4),
    )

    out = pl.pallas_call(
        partial(mlp_kernel, apply_bn=apply_bn, batch=B, f_in=F, k_max=k_max),
        grid=(T,),
        in_specs=[
            pl.BlockSpec((1, Bp, F), lambda t: (t, 0, 0)),        # per-step x
            pl.BlockSpec(w_slab.shape, lambda t: (0, 0, 0)),       # resident W
            pl.BlockSpec(v_slab.shape, lambda t: (0, 0)),          # resident vecs
        ],
        out_specs=pl.BlockSpec((1, Bp, LANE), lambda t: (t, 0, 0)),
        out_shape=jax.ShapeDtypeStruct((T, Bp, LANE), jnp.float32),
        compiler_params=pltpu.CompilerParams(
            dimension_semantics=("parallel",)),                    # v7x: 2 TCs
        cost_estimate=cost,
    )(x, w_slab, v_slab)

    # Single slice for the whole grid; consumers that accept the lane-dense
    # (T, Bp, 128) slab can skip this entirely.
    out = out[:, :B, :out_dim]
    if squeeze:
        out = out[0]
    return out


# ----------------------------------------------------------------------------
# Init (PyTorch nn.Linear / nn.BatchNorm1d defaults) and pure-JAX reference
# ----------------------------------------------------------------------------
def init_params(key, input_size, hidden_size, output_size):
    def linear(key, fan_in, fan_out):
        kw, kb = jax.random.split(key)
        bound = 1.0 / jnp.sqrt(jnp.float32(fan_in))
        w = jax.random.uniform(kw, (fan_in, fan_out), jnp.float32, -bound, bound)
        b = jax.random.uniform(kb, (1, fan_out), jnp.float32, -bound, bound)
        return w, b

    k1, k2, k3, k4 = jax.random.split(key, 4)
    w1, b1 = linear(k1, input_size, hidden_size)
    w2, b2 = linear(k2, hidden_size, hidden_size * 2)
    w3, b3 = linear(k3, hidden_size * 2, hidden_size)
    w4, b4 = linear(k4, hidden_size, output_size)

    def bn_params(dim):
        return jnp.ones((1, dim), jnp.float32), jnp.zeros((1, dim), jnp.float32)

    g1, beta1 = bn_params(hidden_size)
    g2, beta2 = bn_params(hidden_size * 2)
    g3, beta3 = bn_params(hidden_size)

    return dict(w1=w1, b1=b1, g1=g1, beta1=beta1,
                w2=w2, b2=b2, g2=g2, beta2=beta2,
                w3=w3, b3=b3, g3=g3, beta3=beta3,
                w4=w4, b4=b4)


def reference_forward(x, params, apply_bn):
    """Faithful PyTorch-semantics reference (bias-then-BN, two-pass variance).

    Matmuls use bf16 operands + f32 accumulation to match the kernel's MXU path.
    """
    def mm(a, w):
        return jnp.dot(a.astype(jnp.bfloat16), w.astype(jnp.bfloat16),
                       preferred_element_type=jnp.float32)

    def bn(h, g, beta):
        if not apply_bn:
            return h
        mean = jnp.mean(h, axis=0, keepdims=True)
        var = jnp.mean((h - mean) ** 2, axis=0, keepdims=True)
        return (h - mean) * jax.lax.rsqrt(var + EPS) * g + beta

    h = mm(x, params["w1"]) + params["b1"]
    h = jnp.maximum(bn(h, params["g1"], params["beta1"]), 0.0)
    h = mm(h, params["w2"]) + params["b2"]
    h = jnp.maximum(bn(h, params["g2"], params["beta2"]), 0.0)
    h = mm(h, params["w3"]) + params["b3"]
    h = jnp.maximum(bn(h, params["g3"], params["beta3"]), 0.0)
    return mm(h, params["w4"]) + params["b4"]


if __name__ == "__main__":
    INPUT_SIZE = 16
    HIDDEN_SIZE = 32
    OUTPUT_SIZE = 8
    BATCH = 8
    STEPS = 4

    key = jax.random.PRNGKey(0)
    kx, kp = jax.random.split(key)
    x_steps = jax.random.normal(kx, (STEPS, BATCH, INPUT_SIZE), jnp.float32)
    params = init_params(kp, INPUT_SIZE, HIDDEN_SIZE, OUTPUT_SIZE)

    # one-time offline packing into lane-dense slabs
    w_slab, v_slab = pack_params(params)

    fwd = jax.jit(improved_body_motion_forward, static_argnums=3)

    # multi-step (gridded) path: weights DMA'd once for all STEPS forwards
    out = fwd(x_steps, w_slab, v_slab, OUTPUT_SIZE)
    out = jax.block_until_ready(out)
    assert out.shape == (STEPS, BATCH, OUTPUT_SIZE)

    ref = jnp.stack([reference_forward(x_steps[t], params, apply_bn=BATCH > 1)
                     for t in range(STEPS)])
    assert jnp.allclose(out, ref, atol=1e-2, rtol=1e-2), "mismatch (gridded)"

    # single-call (2-D input) path
    out1 = fwd(x_steps[0], w_slab, v_slab, OUTPUT_SIZE)
    out1 = jax.block_until_ready(out1)
    assert out1.shape == (BATCH, OUTPUT_SIZE)
    assert jnp.allclose(out1, ref[0], atol=1e-2, rtol=1e-2), "mismatch (single)"

    print("KERNEL_OK")
</pallas_src>

<mosaic_0001>
module attributes {stable_mosaic.version = 11 : i64} {
  func.func @mlp_kernel(%arg0: i32, %arg1: memref<1x8x16xf32, #tpu.memory_space<vmem>>, %arg2: memref<4x64x128xbf16, #tpu.memory_space<vmem>>, %arg3: memref<16x128xf32, #tpu.memory_space<vmem>>, %arg4: memref<1x8x128xf32, #tpu.memory_space<vmem>>) attributes {dimension_semantics = [#tpu.dimension_semantics<parallel>], iteration_bounds = array<i64: 4>, scalar_prefetch = 0 : i64, scratch_operands = 0 : i64, tpu.core_type = #tpu.core_type<tc>, window_params = [{transform_indices = @transform_0, window_bounds = array<i64: 1, 8, 16>}, {pipeline_mode = #tpu.pipeline_mode<synchronous>, transform_indices = @transform_1, window_bounds = array<i64: 4, 64, 128>}, {pipeline_mode = #tpu.pipeline_mode<synchronous>, transform_indices = @transform_2, window_bounds = array<i64: 16, 128>}, {transform_indices = @transform_3, window_bounds = array<i64: 1, 8, 128>}]} {
    %c0 = arith.constant 0 : index
    %c0_0 = arith.constant 0 : index
    %0 = vector.load %arg3[%c0, %c0_0] : memref<16x128xf32, #tpu.memory_space<vmem>>, vector<16x128xf32>
    %c0_1 = arith.constant 0 : index
    %c0_2 = arith.constant 0 : index
    %c0_3 = arith.constant 0 : index
    %1 = vector.load %arg1[%c0_1, %c0_2, %c0_3] : memref<1x8x16xf32, #tpu.memory_space<vmem>>, vector<1x8x16xf32>
    %2 = vector.shape_cast %1 : vector<1x8x16xf32> to vector<8x16xf32>
    %3 = arith.truncf %2 : vector<8x16xf32> to vector<8x16xbf16>
    %c0_4 = arith.constant 0 : index
    %c0_5 = arith.constant 0 : index
    %c0_6 = arith.constant 0 : index
    %4 = vector.load %arg2[%c0_4, %c0_5, %c0_6] : memref<4x64x128xbf16, #tpu.memory_space<vmem>>, vector<1x64x128xbf16>
    %5 = vector.shape_cast %4 : vector<1x64x128xbf16> to vector<64x128xbf16>
    %6 = vector.extract_strided_slice %5 {offsets = [0, 0], sizes = [16, 128], strides = [1, 1]} : vector<64x128xbf16> to vector<16x128xbf16>
    %cst = arith.constant dense<0.000000e+00> : vector<8x128xf32>
    %7 = tpu.matmul %3, %6, %cst {dimension_numbers = #tpu.dot_dimension_numbers<[1], [0], [0], [1], [0, 0, 1, 1], [], []>} : vector<8x16xbf16>, vector<16x128xbf16>, vector<8x128xf32> -> vector<8x128xf32>
    %8 = vector.extract_strided_slice %0 {offsets = [1, 0], sizes = [1, 128], strides = [1, 1]} : vector<16x128xf32> to vector<1x128xf32>
    %9 = vector.extract_strided_slice %0 {offsets = [2, 0], sizes = [1, 128], strides = [1, 1]} : vector<16x128xf32> to vector<1x128xf32>
    %cst_7 = arith.constant dense<0.000000e+00> : vector<128xf32>
    %10 = vector.multi_reduction <add>, %7, %cst_7 [0] : vector<8x128xf32> to vector<128xf32>
    %11 = vector.shape_cast %10 : vector<128xf32> to vector<1x128xf32>
    %cst_8 = arith.constant 1.250000e-01 : f32
    %12 = vector.broadcast %cst_8 : f32 to vector<1x128xf32>
    %13 = arith.mulf %11, %12 : vector<1x128xf32>
    %14 = vector.broadcast %13 : vector<1x128xf32> to vector<8x128xf32>
    %15 = arith.subf %7, %14 : vector<8x128xf32>
    %16 = arith.mulf %15, %15 : vector<8x128xf32>
    %cst_9 = arith.constant dense<0.000000e+00> : vector<128xf32>
    %17 = vector.multi_reduction <add>, %16, %cst_9 [0] : vector<8x128xf32> to vector<128xf32>
    %18 = vector.shape_cast %17 : vector<128xf32> to vector<1x128xf32>
    %cst_10 = arith.constant 1.250000e-01 : f32
    %19 = vector.broadcast %cst_10 : f32 to vector<1x128xf32>
    %20 = arith.mulf %18, %19 : vector<1x128xf32>
    %21 = vector.broadcast %13 : vector<1x128xf32> to vector<8x128xf32>
    %22 = arith.subf %7, %21 : vector<8x128xf32>
    %cst_11 = arith.constant 9.99999974E-6 : f32
    %23 = vector.broadcast %cst_11 : f32 to vector<1x128xf32>
    %24 = arith.addf %20, %23 : vector<1x128xf32>
    %25 = math.rsqrt %24 : vector<1x128xf32>
    %26 = vector.broadcast %25 : vector<1x128xf32> to vector<8x128xf32>
    %27 = arith.mulf %22, %26 : vector<8x128xf32>
    %28 = vector.broadcast %8 : vector<1x128xf32> to vector<8x128xf32>
    %29 = arith.mulf %27, %28 : vector<8x128xf32>
    %30 = vector.broadcast %9 : vector<1x128xf32> to vector<8x128xf32>
    %31 = arith.addf %29, %30 : vector<8x128xf32>
    %cst_12 = arith.constant 0.000000e+00 : f32
    %32 = vector.broadcast %cst_12 : f32 to vector<8x128xf32>
    %33 = arith.maximumf %31, %32 : vector<8x128xf32>
    %34 = vector.extract_strided_slice %33 {offsets = [0, 0], sizes = [8, 64], strides = [1, 1]} : vector<8x128xf32> to vector<8x64xf32>
    %35 = arith.truncf %34 : vector<8x64xf32> to vector<8x64xbf16>
    %c1 = arith.constant 1 : index
    %c0_13 = arith.constant 0 : index
    %c0_14 = arith.constant 0 : index
    %36 = vector.load %arg2[%c1, %c0_13, %c0_14] : memref<4x64x128xbf16, #tpu.memory_space<vmem>>, vector<1x64x128xbf16>
    %37 = vector.shape_cast %36 : vector<1x64x128xbf16> to vector<64x128xbf16>
    %cst_15 = arith.constant dense<0.000000e+00> : vector<8x128xf32>
    %38 = tpu.matmul %35, %37, %cst_15 {dimension_numbers = #tpu.dot_dimension_numbers<[1], [0], [0], [1], [0, 0, 1, 1], [], []>} : vector<8x64xbf16>, vector<64x128xbf16>, vector<8x128xf32> -> vector<8x128xf32>
    %39 = vector.extract_strided_slice %0 {offsets = [4, 0], sizes = [1, 128], strides = [1, 1]} : vector<16x128xf32> to vector<1x128xf32>
    %40 = vector.extract_strided_slice %0 {offsets = [5, 0], sizes = [1, 128], strides = [1, 1]} : vector<16x128xf32> to vector<1x128xf32>
    %cst_16 = arith.constant dense<0.000000e+00> : vector<128xf32>
    %41 = vector.multi_reduction <add>, %38, %cst_16 [0] : vector<8x128xf32> to vector<128xf32>
    %42 = vector.shape_cast %41 : vector<128xf32> to vector<1x128xf32>
    %cst_17 = arith.constant 1.250000e-01 : f32
    %43 = vector.broadcast %cst_17 : f32 to vector<1x128xf32>
    %44 = arith.mulf %42, %43 : vector<1x128xf32>
    %45 = vector.broadcast %44 : vector<1x128xf32> to vector<8x128xf32>
    %46 = arith.subf %38, %45 : vector<8x128xf32>
    %47 = arith.mulf %46, %46 : vector<8x128xf32>
    %cst_18 = arith.constant dense<0.000000e+00> : vector<128xf32>
    %48 = vector.multi_reduction <add>, %47, %cst_18 [0] : vector<8x128xf32> to vector<128xf32>
    %49 = vector.shape_cast %48 : vector<128xf32> to vector<1x128xf32>
    %cst_19 = arith.constant 1.250000e-01 : f32
    %50 = vector.broadcast %cst_19 : f32 to vector<1x128xf32>
    %51 = arith.mulf %49, %50 : vector<1x128xf32>
    %52 = vector.broadcast %44 : vector<1x128xf32> to vector<8x128xf32>
    %53 = arith.subf %38, %52 : vector<8x128xf32>
    %cst_20 = arith.constant 9.99999974E-6 : f32
    %54 = vector.broadcast %cst_20 : f32 to vector<1x128xf32>
    %55 = arith.addf %51, %54 : vector<1x128xf32>
    %56 = math.rsqrt %55 : vector<1x128xf32>
    %57 = vector.broadcast %56 : vector<1x128xf32> to vector<8x128xf32>
    %58 = arith.mulf %53, %57 : vector<8x128xf32>
    %59 = vector.broadcast %39 : vector<1x128xf32> to vector<8x128xf32>
    %60 = arith.mulf %58, %59 : vector<8x128xf32>
    %61 = vector.broadcast %40 : vector<1x128xf32> to vector<8x128xf32>
    %62 = arith.addf %60, %61 : vector<8x128xf32>
    %cst_21 = arith.constant 0.000000e+00 : f32
    %63 = vector.broadcast %cst_21 : f32 to vector<8x128xf32>
    %64 = arith.maximumf %62, %63 : vector<8x128xf32>
    %65 = vector.extract_strided_slice %64 {offsets = [0, 0], sizes = [8, 64], strides = [1, 1]} : vector<8x128xf32> to vector<8x64xf32>
    %66 = arith.truncf %65 : vector<8x64xf32> to vector<8x64xbf16>
    %c2 = arith.constant 2 : index
    %c0_22 = arith.constant 0 : index
    %c0_23 = arith.constant 0 : index
    %67 = vector.load %arg2[%c2, %c0_22, %c0_23] : memref<4x64x128xbf16, #tpu.memory_space<vmem>>, vector<1x64x128xbf16>
    %68 = vector.shape_cast %67 : vector<1x64x128xbf16> to vector<64x128xbf16>
    %cst_24 = arith.constant dense<0.000000e+00> : vector<8x128xf32>
    %69 = tpu.matmul %66, %68, %cst_24 {dimension_numbers = #tpu.dot_dimension_numbers<[1], [0], [0], [1], [0, 0, 1, 1], [], []>} : vector<8x64xbf16>, vector<64x128xbf16>, vector<8x128xf32> -> vector<8x128xf32>
    %70 = vector.extract_strided_slice %0 {offsets = [7, 0], sizes = [1, 128], strides = [1, 1]} : vector<16x128xf32> to vector<1x128xf32>
    %71 = vector.extract_strided_slice %0 {offsets = [8, 0], sizes = [1, 128], strides = [1, 1]} : vector<16x128xf32> to vector<1x128xf32>
    %cst_25 = arith.constant dense<0.000000e+00> : vector<128xf32>
    %72 = vector.multi_reduction <add>, %69, %cst_25 [0] : vector<8x128xf32> to vector<128xf32>
    %73 = vector.shape_cast %72 : vector<128xf32> to vector<1x128xf32>
    %cst_26 = arith.constant 1.250000e-01 : f32
    %74 = vector.broadcast %cst_26 : f32 to vector<1x128xf32>
    %75 = arith.mulf %73, %74 : vector<1x128xf32>
    %76 = vector.broadcast %75 : vector<1x128xf32> to vector<8x128xf32>
    %77 = arith.subf %69, %76 : vector<8x128xf32>
    %78 = arith.mulf %77, %77 : vector<8x128xf32>
    %cst_27 = arith.constant dense<0.000000e+00> : vector<128xf32>
    %79 = vector.multi_reduction <add>, %78, %cst_27 [0] : vector<8x128xf32> to vector<128xf32>
    %80 = vector.shape_cast %79 : vector<128xf32> to vector<1x128xf32>
    %cst_28 = arith.constant 1.250000e-01 : f32
    %81 = vector.broadcast %cst_28 : f32 to vector<1x128xf32>
    %82 = arith.mulf %80, %81 : vector<1x128xf32>
    %83 = vector.broadcast %75 : vector<1x128xf32> to vector<8x128xf32>
    %84 = arith.subf %69, %83 : vector<8x128xf32>
    %cst_29 = arith.constant 9.99999974E-6 : f32
    %85 = vector.broadcast %cst_29 : f32 to vector<1x128xf32>
    %86 = arith.addf %82, %85 : vector<1x128xf32>
    %87 = math.rsqrt %86 : vector<1x128xf32>
    %88 = vector.broadcast %87 : vector<1x128xf32> to vector<8x128xf32>
    %89 = arith.mulf %84, %88 : vector<8x128xf32>
    %90 = vector.broadcast %70 : vector<1x128xf32> to vector<8x128xf32>
    %91 = arith.mulf %89, %90 : vector<8x128xf32>
    %92 = vector.broadcast %71 : vector<1x128xf32> to vector<8x128xf32>
    %93 = arith.addf %91, %92 : vector<8x128xf32>
    %cst_30 = arith.constant 0.000000e+00 : f32
    %94 = vector.broadcast %cst_30 : f32 to vector<8x128xf32>
    %95 = arith.maximumf %93, %94 : vector<8x128xf32>
    %96 = vector.extract_strided_slice %95 {offsets = [0, 0], sizes = [8, 64], strides = [1, 1]} : vector<8x128xf32> to vector<8x64xf32>
    %97 = arith.truncf %96 : vector<8x64xf32> to vector<8x64xbf16>
    %c3 = arith.constant 3 : index
    %c0_31 = arith.constant 0 : index
    %c0_32 = arith.constant 0 : index
    %98 = vector.load %arg2[%c3, %c0_31, %c0_32] : memref<4x64x128xbf16, #tpu.memory_space<vmem>>, vector<1x64x128xbf16>
    %99 = vector.shape_cast %98 : vector<1x64x128xbf16> to vector<64x128xbf16>
    %cst_33 = arith.constant dense<0.000000e+00> : vector<8x128xf32>
    %100 = tpu.matmul %97, %99, %cst_33 {dimension_numbers = #tpu.dot_dimension_numbers<[1], [0], [0], [1], [0, 0, 1, 1], [], []>} : vector<8x64xbf16>, vector<64x128xbf16>, vector<8x128xf32> -> vector<8x128xf32>
    %101 = vector.extract_strided_slice %0 {offsets = [9, 0], sizes = [1, 128], strides = [1, 1]} : vector<16x128xf32> to vector<1x128xf32>
    %102 = vector.broadcast %101 : vector<1x128xf32> to vector<8x128xf32>
    %103 = arith.addf %100, %102 : vector<8x128xf32>
    %c0_34 = arith.constant 0 : index
    %c0_35 = arith.constant 0 : index
    %c0_36 = arith.constant 0 : index
    %104 = vector.load %arg4[%c0_34, %c0_35, %c0_36] : memref<1x8x128xf32, #tpu.memory_space<vmem>>, vector<1x8x128xf32>
    %105 = vector.shape_cast %104 : vector<1x8x128xf32> to vector<8x128xf32>
    %106 = vector.shape_cast %103 : vector<8x128xf32> to vector<1x8x128xf32>
    tpu.vector_store %arg4[%c0_34, %c0_35, %c0_36], %106 {strides = array<i32>} : memref<1x8x128xf32, #tpu.memory_space<vmem>>, vector<1x8x128xf32>,
    return
  }
  func.func @transform_0(%arg0: i32) -> (i32, i32, i32) {
    %c0_i32 = arith.constant 0 : i32
    %c0_i32_0 = arith.constant 0 : i32
    %c0_i32_1 = arith.constant 0 : i32
    return %arg0, %c0_i32, %c0_i32_0 : i32, i32, i32
  }
  func.func @transform_1(%arg0: i32) -> (i32, i32, i32) {
    %c0_i32 = arith.constant 0 : i32
    %c0_i32_0 = arith.constant 0 : i32
    %c0_i32_1 = arith.constant 0 : i32
    %c0_i32_2 = arith.constant 0 : i32
    return %c0_i32, %c0_i32_0, %c0_i32_1 : i32, i32, i32
  }
  func.func @transform_2(%arg0: i32) -> (i32, i32) {
    %c0_i32 = arith.constant 0 : i32
    %c0_i32_0 = arith.constant 0 : i32
    %c0_i32_1 = arith.constant 0 : i32
    return %c0_i32, %c0_i32_0 : i32, i32
  }
  func.func @transform_3(%arg0: i32) -> (i32, i32, i32) {
    %c0_i32 = arith.constant 0 : i32
    %c0_i32_0 = arith.constant 0 : i32
    %c0_i32_1 = arith.constant 0 : i32
    return %arg0, %c0_i32, %c0_i32_0 : i32, i32, i32
  }
}

</mosaic_0001>

<llo_original>
// kernel: improved_body_motion_forward.1
$region0: #{improved_body_motion_forward.1}
  #allocation0 [shape = 'u32[]', space=smem, size = 0x4, offset = 0x4, fixed_abs, tag = 'smem constant byte address 0x4 - core index']
  #allocation1 [shape = 'u32[144,128]{1,0:T(1,128)}', space=vmem, size = 0x12000, scoped, tag = 'internal scratch']
  %s0 = inlined_call_operand.hbm [shape: f32[4,8,16], index: 0, kind: input, shape index: {}]
  %s1 = inlined_call_operand.hbm [shape: bf16[4,64,128], index: 1, kind: input, shape index: {}]
  %s2 = inlined_call_operand.hbm [shape: f32[16,128], index: 2, kind: input, shape index: {}]
  %s3 = inlined_call_operand.hbm [shape: f32[4,8,128], index: 3, kind: output, shape index: {}]
  %s4 = sld [smem:[#allocation0]]
  $region57: #{improved_body_motion_forward.1} parent=0
    _
  %s6 = ssub.s32 1, %s4
  %s7 = scalar_select 0, %s6, %s4
  $region1: #{improved_body_motion_forward.1} parent=0
    #allocation2 [shape = 'u8[8192]{0}', space=vmem, size = 0x2000, scoped, tag = 'input window, operand 0']
    #allocation3 [shape = 's32[2]{0}', space=sflag, size = 0x8, scoped, tag = 'scoped memory for improved_body_motion_forward.1']
    #allocation4 [shape = 's32[2]{0}', space=sflag, size = 0x8, scoped, tag = 'scoped memory for improved_body_motion_forward.1']
    #allocation5 [shape = 'u8[65536]{0}', space=vmem, size = 0x10000, scoped, tag = 'input window, operand 1, single buffered']
    #allocation6 [shape = 's32[1]{0}', space=sflag, size = 0x4, scoped, tag = 'scoped memory for improved_body_motion_forward.1']
    #allocation7 [shape = 'u8[8192]{0}', space=vmem, size = 0x2000, scoped, tag = 'input window, operand 2, single buffered']
    #allocation8 [shape = 'u8[8192]{0}', space=vmem, size = 0x2000, scoped, tag = 'output window, operand 0']
    %8 = vsyncpa [#allocation3], 0
    %s9 = scalar_lea.sflag [#allocation3], 1
    %10 = vsyncpa %s9, 0
    %11 = vsyncpa [#allocation6], 0
    %12 = vsyncpa [#allocation4], 0
    %s13 = scalar_lea.sflag [#allocation4], 1
    %14 = vsyncpa %s13, 0
    loop: start=0, step=1, limit=6
    $region2: #{improved_body_motion_forward.1} parent=1 // loop_pre_header
      _
    $region3: #{improved_body_motion_forward.1} parent=1 // loop_header
      %s16 = sphi 0, %s20
      %p17 = scmp.ge.s32.totalorder %s16, 6
      %s26 = sphi 0, %s28
      %s29 = sphi 0, %s26
      %s30 = sphi 0, %s29
      %s46 = sphi 0, %s30
      %s50 = sphi 0, %s50
      %s52 = sphi 0, %s50
      %s53 = sphi 0, %s52
      %s67 = sphi 0, %s53
      %s71 = sphi 0, %s71
      %s73 = sphi 0, %s71
      %s74 = sphi 0, %s73
      %s88 = sphi 0, %s74
      %s94 = sphi 0, %s96
      %s97 = sphi 0, %s94
      %s98 = sphi 0, %s97
      %s114 = sphi 0, %s98
    $region4: #{improved_body_motion_forward.1} parent=1 // loop_header_branch
      %19 = sbr.rel (%p17) target = $region8
    $region5: #{improved_body_motion_forward.1} parent=1 // loop_body
      %s21 = ssub.s32 %s16, 1
      %s22 = ssub.s32 %s16, 2
      %s23 = sadd.s32 %s16, 1
      %s24 = ssub.s32 %s16, %s23
      %p25 = scmp.eq.s32.totalorder %s24, 0
      %s27 = sadd.s32 %s26, 1
      %s28 = scalar_select %p25, %s26, %s27
      %p31 = pneg %p25
      %p32 = scmp.eq.s32.totalorder %s16, 3
      %p33 = por %p31, %p32
      %p34 = scmp.ne.s32.totalorder %s26, %s29
      %p35 = scmp.eq.s32.totalorder %s16, 0
      %p36 = por %p34, %p35
      %p37 = scmp.ne.s32.totalorder %s26, %s29
      %p38 = scmp.eq.s32.totalorder %s21, 3
      %p39 = por %p37, %p38
      %p40 = scmp.ne.s32.totalorder %s29, %s30
      %p41 = scmp.eq.s32.totalorder %s21, 0
      %p42 = por %p40, %p41
      %p43 = scmp.ne.s32.totalorder %s29, %s30
      %p44 = scmp.eq.s32.totalorder %s22, 3
      %p45 = por %p43, %p44
      %p47 = scmp.ne.s32.totalorder %s30, %s46
      %p48 = scmp.eq.s32.totalorder %s22, 0
      %p49 = por %p47, %p48
      %s51 = sadd.s32 %s50, 1
      %p54 = scmp.eq.s32.totalorder %s16, 3
      %p55 = scmp.ne.s32.totalorder %s50, %s52
      %p56 = scmp.eq.s32.totalorder %s16, 0
      %p57 = por %p55, %p56
      %p58 = scmp.ne.s32.totalorder %s50, %s52
      %p59 = scmp.eq.s32.totalorder %s21, 3
      %p60 = por %p58, %p59
      %p61 = scmp.ne.s32.totalorder %s52, %s53
      %p62 = scmp.eq.s32.totalorder %s21, 0
      %p63 = por %p61, %p62
      %p64 = scmp.ne.s32.totalorder %s52, %s53
      %p65 = scmp.eq.s32.totalorder %s22, 3
      %p66 = por %p64, %p65
      %p68 = scmp.ne.s32.totalorder %s53, %s67
      %p69 = scmp.eq.s32.totalorder %s22, 0
      %p70 = por %p68, %p69
      %s72 = sadd.s32 %s71, 1
      %p75 = scmp.eq.s32.totalorder %s16, 3
      %p76 = scmp.ne.s32.totalorder %s71, %s73
      %p77 = scmp.eq.s32.totalorder %s16, 0
      %p78 = por %p76, %p77
      %p79 = scmp.ne.s32.totalorder %s71, %s73
      %p80 = scmp.eq.s32.totalorder %s21, 3
      %p81 = por %p79, %p80
      %p82 = scmp.ne.s32.totalorder %s73, %s74
      %p83 = scmp.eq.s32.totalorder %s21, 0
      %p84 = por %p82, %p83
      %p85 = scmp.ne.s32.totalorder %s73, %s74
      %p86 = scmp.eq.s32.totalorder %s22, 3
      %p87 = por %p85, %p86
      %p89 = scmp.ne.s32.totalorder %s74, %s88
      %p90 = scmp.eq.s32.totalorder %s22, 0
      %p91 = por %p89, %p90
      %s92 = ssub.s32 %s16, %s23
      %p93 = scmp.eq.s32.totalorder %s92, 0
      %s95 = sadd.s32 %s94, 1
      %s96 = scalar_select %p93, %s94, %s95
      %p99 = pneg %p93
      %p100 = scmp.eq.s32.totalorder %s16, 3
      %p101 = por %p99, %p100
      %p102 = scmp.ne.s32.totalorder %s94, %s97
      %p103 = scmp.eq.s32.totalorder %s16, 0
      %p104 = por %p102, %p103
      %p105 = scmp.ne.s32.totalorder %s94, %s97
      %p106 = scmp.eq.s32.totalorder %s21, 3
      %p107 = por %p105, %p106
      %p108 = scmp.ne.s32.totalorder %s97, %s98
      %p109 = scmp.eq.s32.totalorder %s21, 0
      %p110 = por %p108, %p109
      %p111 = scmp.ne.s32.totalorder %s97, %s98
      %p112 = scmp.eq.s32.totalorder %s22, 3
      %p113 = por %p111, %p112
      %p115 = scmp.ne.s32.totalorder %s98, %s114
      %p116 = scmp.eq.s32.totalorder %s22, 0
      %p117 = por %p115, %p116
      %p118 = scmp.le.s32.totalorder 1, %s16
      %p119 = scmp.lt.s32.totalorder %s16, 5
      %p120 = pnand %p118, %p119
      %p121 = pneg %p120
      // Predicated region
      $region9: #{improved_body_motion_forward.1} parent=5 // pred_check
        _
      $region10: #{improved_body_motion_forward.1} parent=5 // pred_check_branch
        %123 = sbr.rel (%p120) target = $region12
      $region11: #{improved_body_motion_forward.1} parent=5 // pred_region
        %s124 = ssub.s32 %s16, 1
        // Predicated region
        $region13: #{improved_body_motion_forward.1} parent=11 // pred_check
          %p125 = pneg %p63
        $region14: #{improved_body_motion_forward.1} parent=11 // pred_check_branch
          %127 = sbr.rel (%p125) target = $region16
        $region15: #{improved_body_motion_forward.1} parent=11 // pred_region
          %s129 = ssub.s32 2048, 2048
          %130 = vsyncadd [#allocation6], %s129
          %s131 = sshll.u32 [#allocation5], 4
          %s132 = int_to_ptr.vmem [resolvable:$true] %s131
          %137 = dma.hbm_to_vmem [thread:$0]  %s1, 2048, %s132, [#allocation6], 64, 64, 4
        $region16: #{improved_body_motion_forward.1} parent=11 // pred_fallthru
          _
        // Predicated region
        $region17: #{improved_body_motion_forward.1} parent=11 // pred_check
          %p138 = pneg %p84
        $region18: #{improved_body_motion_forward.1} parent=11 // pred_check_branch
          %140 = sbr.rel (%p138) target = $region20
        $region19: #{improved_body_motion_forward.1} parent=11 // pred_region
          %s142 = ssub.s32 256, 256
          %143 = vsyncadd [#allocation6], %s142
          %s144 = sshll.u32 [#allocation7], 4
          %s145 = int_to_ptr.vmem [resolvable:$true] %s144
          %150 = dma.hbm_to_vmem [thread:$0]  %s2, 256, %s145, [#allocation6], 128, 128, 8
        $region20: #{improved_body_motion_forward.1} parent=11 // pred_fallthru
          _
      $region12: #{improved_body_motion_forward.1} parent=5 // pred_fallthru
        _
      %p151 = scmp.lt.s32.totalorder %s16, 4
      // Predicated region
      $region21: #{improved_body_motion_forward.1} parent=5 // pred_check
        %p152 = pneg %p151
      $region22: #{improved_body_motion_forward.1} parent=5 // pred_check_branch
        %154 = sbr.rel (%p152) target = $region24
      $region23: #{improved_body_motion_forward.1} parent=5 // pred_region
        // Predicated region
        $region25: #{improved_body_motion_forward.1} parent=23 // pred_check
          %p155 = pneg %p36
        $region26: #{improved_body_motion_forward.1} parent=23 // pred_check_branch
          %157 = sbr.rel (%p155) target = $region28
        $region27: #{improved_body_motion_forward.1} parent=23 // pred_region
          %s158 = sand.u32 %s26, 1
          %s159 = scalar_lea.sflag [#allocation3], %s158
          %s160 = sand.u32 %s26, 1
          %s161 = smul.addr %s160, 8
          %s162 = scalar_lea.vmem [#allocation2], %s161
          %s164 = ssub.s32 128, 128
          %165 = vsyncadd %s159, %s164
          %s166 = smul.addr %s16, 128
          %s167 = scalar_lea.hbm %s0, %s166
          %s169 = sshll.u32 %s162, 4
          %s170 = int_to_ptr.vmem [resolvable:$true] %s169
          %172 = dma.hbm_to_vmem [thread:$0]  %s167, 128, %s170, %s159
        $region28: #{improved_body_motion_forward.1} parent=23 // pred_fallthru
          _
      $region24: #{improved_body_motion_forward.1} parent=5 // pred_fallthru
        _
      %p173 = scmp.le.s32.totalorder 1, %s16
      %p174 = scmp.lt.s32.totalorder %s16, 5
      %p175 = pnand %p173, %p174
      %p176 = pneg %p175
      // Predicated region
      $region29: #{improved_body_motion_forward.1} parent=5 // pred_check
        _
      $region30: #{improved_body_motion_forward.1} parent=5 // pred_check_branch
        %178 = sbr.rel (%p175) target = $region32
      $region31: #{improved_body_motion_forward.1} parent=5 // pred_region
        %s179 = ssub.s32 %s16, 1
        %s180 = sand.u32 %s29, 1
        %s181 = scalar_lea.sflag [#allocation3], %s180
        %s182 = sand.u32 %s29, 1
        %s183 = smul.addr %s182, 8
        %s184 = scalar_lea.vmem [#allocation2], %s183
        // Predicated region
        $region33: #{improved_body_motion_forward.1} parent=31 // pred_check
          %p185 = pneg %p42
        $region34: #{improved_body_motion_forward.1} parent=31 // pred_check_branch
          %187 = sbr.rel (%p185) target = $region36
        $region35: #{improved_body_motion_forward.1} parent=31 // pred_region
          %188 = dma.done %s181, 128
        $region36: #{improved_body_motion_forward.1} parent=31 // pred_fallthru
          _
        // Predicated region
        $region37: #{improved_body_motion_forward.1} parent=31 // pred_check
          %p189 = pneg %p63
        $region38: #{improved_body_motion_forward.1} parent=31 // pred_check_branch
          %191 = sbr.rel (%p189) target = $region40
        $region39: #{improved_body_motion_forward.1} parent=31 // pred_region
          %192 = dma.done [#allocation6], 2048
        $region40: #{improved_body_motion_forward.1} parent=31 // pred_fallthru
          _
        // Predicated region
        $region41: #{improved_body_motion_forward.1} parent=31 // pred_check
          %p193 = pneg %p84
        $region42: #{improved_body_motion_forward.1} parent=31 // pred_check_branch
          %195 = sbr.rel (%p193) target = $region44
        $region43: #{improved_body_motion_forward.1} parent=31 // pred_region
          %196 = dma.done [#allocation6], 256
        $region44: #{improved_body_motion_forward.1} parent=31 // pred_fallthru
          _
        %s197 = sand.u32 %s29, 1
        %s198 = scalar_lea.sflag [#allocation3], %s197
        %s199 = sand.u32 %s29, 1
        %s200 = smul.addr %s199, 8
        %s201 = scalar_lea.vmem [#allocation2], %s200
        %p202 = pneg %p42
        %p203 = pneg %p39
        %p204 = pneg %p63
        %p205 = pneg %p60
        %p206 = pneg %p84
        %p207 = pneg %p81
        %p208 = pneg %p110
        %p209 = pneg %p107
        %s210 = sand.u32 %s97, 1
        %s211 = scalar_lea.sflag [#allocation4], %s210
        %s212 = sand.u32 %s97, 1
        %s213 = smul.addr %s212, 8
        %s214 = scalar_lea.vmem [#allocation8], %s213
        %v216 = vld [vmem:[#allocation7] sm:$0xff]
        %v217 = vld [vmem:[#allocation7 + $0x8] sm:$0xff]
        %v218 = vld [vmem:[%s184] sm:$0xff]
        %v219 = vpack.c.bf16 %v218, %v218
        %v220 = vld [vmem:[#allocation5] sm:$0xf]
        %v221 = vld [vmem:[#allocation5 + $0x4] sm:$0xf]
        %v224 = vunpack.c.l.b16 %v220
        %v225 = vunpack.c.l.b16 %v221
        %v226 = vpack.c.b16 %v225, %v224
        %vm228 = vcmask 130048
        %v230 = vsel %vm228, %v219, 0
        %232 = vmatprep.subr.bf16.mxu0 0
        %233 = vmatpush1.bf16.msra.mxu0 %v226
        %234 = vmatprep.subr.bf16.mxu0 0
        %235 = vmatpush1.bf16.msra.mxu0 0
        %236 = vmatprep.subr.bf16.mxu0 0
        %237 = vmatpush1.bf16.msra.mxu0 0
        %238 = vmatprep.subr.bf16.mxu0 0
        %239 = vmatpush1.bf16.msra.mxu0 0
        %240 = vmatprep.subr.bf16.mxu0 0
        %241 = vmatpush1.bf16.msra.mxu0 0
        %242 = vmatprep.subr.bf16.mxu0 0
        %243 = vmatpush1.bf16.msra.mxu0 0
        %244 = vmatprep.subr.bf16.mxu0 0
        %245 = vmatpush1.bf16.msra.mxu0 0
        %246 = vmatprep.subr.bf16.mxu0 0
        %247 = vmatpush1.bf16.msra.mxu0 0
        %248 = vmatprep.subr.bf16.mxu0 0
        %249 = vmatpush1.bf16.msra.mxu0 0
        %250 = vmatprep.subr.bf16.mxu0 0
        %251 = vmatpush1.bf16.msra.mxu0 0
        %252 = vmatprep.subr.bf16.mxu0 0
        %253 = vmatpush1.bf16.msra.mxu0 0
        %254 = vmatprep.subr.bf16.mxu0 0
        %255 = vmatpush1.bf16.msra.mxu0 0
        %256 = vmatprep.subr.bf16.mxu0 0
        %257 = vmatpush1.bf16.msra.mxu0 0
        %258 = vmatprep.subr.bf16.mxu0 0
        %259 = vmatpush1.bf16.msra.mxu0 0
        %260 = vmatprep.subr.bf16.mxu0 0
        %261 = vmatpush1.bf16.msra.mxu0 0
        %262 = vmatprep.subr.bf16.mxu0 0
        %263 = vmatpush1.bf16.msra.mxu0 0
        %264 = vmatprep.mubr.bf16.mxu0 0
        %265 = vmatmul.mubr.bf16.gmra.mrb[0].mxu0 %v230
        %v266 = vpop.f32.mrb[0].mxu0
        %v267 = vadd.f32 0.0, %v266
        %v268 = vpop.f32.mrb[0].mxu0
        %v269 = vpop.f32.mrb[0].mxu0
        %v270 = vpop.f32.mrb[0].mxu0
        %271 = vdwg.mxu0
        %v272 = vrot.slane %v267, 4
        %v273 = vadd.f32 %v267, %v272
        %v274 = vrot.slane %v273, 2
        %v275 = vadd.f32 %v273, %v274
        %v276 = vrot.slane %v275, 1
        %v277 = vadd.f32 %v275, %v276
        %v278 = vmul.f32 %v277, 0.125
        %v279 = vsub.f32 %v267, %v278
        %v280 = vmul.f32 %v279, %v279
        %v281 = vrot.slane %v280, 4
        %v282 = vadd.f32 %v280, %v281
        %v283 = vrot.slane %v282, 2
        %v284 = vadd.f32 %v282, %v283
        %v285 = vrot.slane %v284, 1
        %v286 = vadd.f32 %v284, %v285
        %v287 = vmul.f32 %v286, 0.125
        %v288 = vadd.f32 %v287, 1e-05
        %v289 = vrsqrt.pop %v288
        %v290 = vmul.f32 %v279, %v289
        %v291 = vlaneseq
        %v292 = vshrl.u32 %v291, 7
        %v293 = vsub.s32 1, %v292
        %v294 = vrot.slane %v216, %v293
        %v295 = vmul.f32 %v290, %v294
        %v296 = vlaneseq
        %v297 = vshrl.u32 %v296, 7
        %v298 = vsub.s32 2, %v297
        %v299 = vrot.slane %v216, %v298
        %v300 = vadd.f32 %v295, %v299
        %v301 = vmax.f32 %v300, 0.0
        %v302 = vpack.c.bf16 %v301, %v301
        %s303 = scalar_lea.vmem [#allocation5], 32
        %v304 = vld [vmem:[%s303] sm:$0xf]
        %v305 = vld [vmem:[%s303 + $0x4] sm:$0xf]
        %v306 = vld [vmem:[%s303 + $0x8] sm:$0xf]
        %v307 = vld [vmem:[%s303 + $0xc] sm:$0xf]
        %v308 = vld [vmem:[%s303 + $0x10] sm:$0xf]
        %v309 = vld [vmem:[%s303 + $0x14] sm:$0xf]
        %v310 = vld [vmem:[%s303 + $0x18] sm:$0xf]
        %v311 = vld [vmem:[%s303 + $0x1c] sm:$0xf]
        %v320 = vunpack.c.l.b16 %v304
        %v321 = vunpack.c.l.b16 %v305
        %v322 = vunpack.c.l.b16 %v306
        %v323 = vunpack.c.l.b16 %v307
        %v324 = vunpack.c.l.b16 %v308
        %v325 = vunpack.c.l.b16 %v309
        %v326 = vunpack.c.l.b16 %v310
        %v327 = vunpack.c.l.b16 %v311
        %v328 = vpack.c.b16 %v321, %v320
        %v329 = vpack.c.b16 %v323, %v322
        %v330 = vpack.c.b16 %v325, %v324
        %v331 = vpack.c.b16 %v327, %v326
        %vm336 = vcmask 523264
        %v338 = vsel %vm336, %v302, 0
        %340 = vmatprep.subr.bf16.mxu0 0
        %341 = vmatpush1.bf16.msra.mxu0 %v328
        %342 = vmatprep.subr.bf16.mxu0 0
        %343 = vmatpush1.bf16.msra.mxu0 %v329
        %344 = vmatprep.subr.bf16.mxu0 0
        %345 = vmatpush1.bf16.msra.mxu0 %v330
        %346 = vmatprep.subr.bf16.mxu0 0
        %347 = vmatpush1.bf16.msra.mxu0 %v331
        %348 = vmatprep.subr.bf16.mxu0 0
        %349 = vmatpush1.bf16.msra.mxu0 0
        %350 = vmatprep.subr.bf16.mxu0 0
        %351 = vmatpush1.bf16.msra.mxu0 0
        %352 = vmatprep.subr.bf16.mxu0 0
        %353 = vmatpush1.bf16.msra.mxu0 0
        %354 = vmatprep.subr.bf16.mxu0 0
        %355 = vmatpush1.bf16.msra.mxu0 0
        %356 = vmatprep.subr.bf16.mxu0 0
        %357 = vmatpush1.bf16.msra.mxu0 0
        %358 = vmatprep.subr.bf16.mxu0 0
        %359 = vmatpush1.bf16.msra.mxu0 0
        %360 = vmatprep.subr.bf16.mxu0 0
        %361 = vmatpush1.bf16.msra.mxu0 0
        %362 = vmatprep.subr.bf16.mxu0 0
        %363 = vmatpush1.bf16.msra.mxu0 0
        %364 = vmatprep.subr.bf16.mxu0 0
        %365 = vmatpush1.bf16.msra.mxu0 0
        %366 = vmatprep.subr.bf16.mxu0 0
        %367 = vmatpush1.bf16.msra.mxu0 0
        %368 = vmatprep.subr.bf16.mxu0 0
        %369 = vmatpush1.bf16.msra.mxu0 0
        %370 = vmatprep.subr.bf16.mxu0 0
        %371 = vmatpush1.bf16.msra.mxu0 0
        %372 = vmatprep.mubr.bf16.mxu0 0
        %373 = vmatmul.mubr.bf16.gmra.mrb[0].mxu0 %v338
        %v374 = vpop.f32.mrb[0].mxu0
        %v375 = vadd.f32 0.0, %v374
        %v376 = vpop.f32.mrb[0].mxu0
        %v377 = vpop.f32.mrb[0].mxu0
        %v378 = vpop.f32.mrb[0].mxu0
        %379 = vdwg.mxu0
        %v380 = vrot.slane %v375, 4
        %v381 = vadd.f32 %v375, %v380
        %v382 = vrot.slane %v381, 2
        %v383 = vadd.f32 %v381, %v382
        %v384 = vrot.slane %v383, 1
        %v385 = vadd.f32 %v383, %v384
        %v386 = vmul.f32 %v385, 0.125
        %v387 = vsub.f32 %v375, %v386
        %v388 = vmul.f32 %v387, %v387
        %v389 = vrot.slane %v388, 4
        %v390 = vadd.f32 %v388, %v389
        %v391 = vrot.slane %v390, 2
        %v392 = vadd.f32 %v390, %v391
        %v393 = vrot.slane %v392, 1
        %v394 = vadd.f32 %v392, %v393
        %v395 = vmul.f32 %v394, 0.125
        %v396 = vadd.f32 %v395, 1e-05
        %v397 = vrsqrt.pop %v396
        %v398 = vmul.f32 %v387, %v397
        %v399 = vlaneseq
        %v400 = vshrl.u32 %v399, 7
        %v401 = vsub.s32 4, %v400
        %v402 = vrot.slane %v216, %v401
        %v403 = vmul.f32 %v398, %v402
        %v404 = vlaneseq
        %v405 = vshrl.u32 %v404, 7
        %v406 = vsub.s32 5, %v405
        %v407 = vrot.slane %v216, %v406
        %v408 = vadd.f32 %v403, %v407
        %v409 = vmax.f32 %v408, 0.0
        %v410 = vpack.c.bf16 %v409, %v409
        %s411 = scalar_lea.vmem [#allocation5], 64
        %v412 = vld [vmem:[%s411] sm:$0xf]
        %v413 = vld [vmem:[%s411 + $0x4] sm:$0xf]
        %v414 = vld [vmem:[%s411 + $0x8] sm:$0xf]
        %v415 = vld [vmem:[%s411 + $0xc] sm:$0xf]
        %v416 = vld [vmem:[%s411 + $0x10] sm:$0xf]
        %v417 = vld [vmem:[%s411 + $0x14] sm:$0xf]
        %v418 = vld [vmem:[%s411 + $0x18] sm:$0xf]
        %v419 = vld [vmem:[%s411 + $0x1c] sm:$0xf]
        %v428 = vunpack.c.l.b16 %v412
        %v429 = vunpack.c.l.b16 %v413
        %v430 = vunpack.c.l.b16 %v414
        %v431 = vunpack.c.l.b16 %v415
        %v432 = vunpack.c.l.b16 %v416
        %v433 = vunpack.c.l.b16 %v417
        %v434 = vunpack.c.l.b16 %v418
        %v435 = vunpack.c.l.b16 %v419
        %v436 = vpack.c.b16 %v429, %v428
        %v437 = vpack.c.b16 %v431, %v430
        %v438 = vpack.c.b16 %v433, %v432
        %v439 = vpack.c.b16 %v435, %v434
        %v445 = vsel %vm336, %v410, 0
        %447 = vmatprep.subr.bf16.mxu0 0
        %448 = vmatpush1.bf16.msra.mxu0 %v436
        %449 = vmatprep.subr.bf16.mxu0 0
        %450 = vmatpush1.bf16.msra.mxu0 %v437
        %451 = vmatprep.subr.bf16.mxu0 0
        %452 = vmatpush1.bf16.msra.mxu0 %v438
        %453 = vmatprep.subr.bf16.mxu0 0
        %454 = vmatpush1.bf16.msra.mxu0 %v439
        %455 = vmatprep.subr.bf16.mxu0 0
        %456 = vmatpush1.bf16.msra.mxu0 0
        %457 = vmatprep.subr.bf16.mxu0 0
        %458 = vmatpush1.bf16.msra.mxu0 0
        %459 = vmatprep.subr.bf16.mxu0 0
        %460 = vmatpush1.bf16.msra.mxu0 0
        %461 = vmatprep.subr.bf16.mxu0 0
        %462 = vmatpush1.bf16.msra.mxu0 0
        %463 = vmatprep.subr.bf16.mxu0 0
        %464 = vmatpush1.bf16.msra.mxu0 0
        %465 = vmatprep.subr.bf16.mxu0 0
        %466 = vmatpush1.bf16.msra.mxu0 0
        %467 = vmatprep.subr.bf16.mxu0 0
        %468 = vmatpush1.bf16.msra.mxu0 0
        %469 = vmatprep.subr.bf16.mxu0 0
        %470 = vmatpush1.bf16.msra.mxu0 0
        %471 = vmatprep.subr.bf16.mxu0 0
        %472 = vmatpush1.bf16.msra.mxu0 0
        %473 = vmatprep.subr.bf16.mxu0 0
        %474 = vmatpush1.bf16.msra.mxu0 0
        %475 = vmatprep.subr.bf16.mxu0 0
        %476 = vmatpush1.bf16.msra.mxu0 0
        %477 = vmatprep.subr.bf16.mxu0 0
        %478 = vmatpush1.bf16.msra.mxu0 0
        %479 = vmatprep.mubr.bf16.mxu0 0
        %480 = vmatmul.mubr.bf16.gmra.mrb[0].mxu0 %v445
        %v481 = vpop.f32.mrb[0].mxu0
        %v482 = vadd.f32 0.0, %v481
        %v483 = vpop.f32.mrb[0].mxu0
        %v484 = vpop.f32.mrb[0].mxu0
        %v485 = vpop.f32.mrb[0].mxu0
        %486 = vdwg.mxu0
        %v487 = vrot.slane %v482, 4
        %v488 = vadd.f32 %v482, %v487
        %v489 = vrot.slane %v488, 2
        %v490 = vadd.f32 %v488, %v489
        %v491 = vrot.slane %v490, 1
        %v492 = vadd.f32 %v490, %v491
        %v493 = vmul.f32 %v492, 0.125
        %v494 = vsub.f32 %v482, %v493
        %v495 = vmul.f32 %v494, %v494
        %v496 = vrot.slane %v495, 4
        %v497 = vadd.f32 %v495, %v496
        %v498 = vrot.slane %v497, 2
        %v499 = vadd.f32 %v497, %v498
        %v500 = vrot.slane %v499, 1
        %v501 = vadd.f32 %v499, %v500
        %v502 = vmul.f32 %v501, 0.125
        %v503 = vadd.f32 %v502, 1e-05
        %v504 = vrsqrt.pop %v503
        %v505 = vmul.f32 %v494, %v504
        %v506 = vlaneseq
        %v507 = vshrl.u32 %v506, 7
        %v508 = vsub.s32 7, %v507
        %v509 = vrot.slane %v216, %v508
        %v510 = vmul.f32 %v505, %v509
        %v511 = vlaneseq
        %v512 = vshrl.u32 %v511, 7
        %v513 = vsub.s32 0, %v512
        %v514 = vrot.slane %v217, %v513
        %v515 = vadd.f32 %v510, %v514
        %v516 = vmax.f32 %v515, 0.0
        %v517 = vpack.c.bf16 %v516, %v516
        %s518 = scalar_lea.vmem [#allocation5], 96
        %v519 = vld [vmem:[%s518] sm:$0xf]
        %v520 = vld [vmem:[%s518 + $0x4] sm:$0xf]
        %v521 = vld [vmem:[%s518 + $0x8] sm:$0xf]
        %v522 = vld [vmem:[%s518 + $0xc] sm:$0xf]
        %v523 = vld [vmem:[%s518 + $0x10] sm:$0xf]
        %v524 = vld [vmem:[%s518 + $0x14] sm:$0xf]
        %v525 = vld [vmem:[%s518 + $0x18] sm:$0xf]
        %v526 = vld [vmem:[%s518 + $0x1c] sm:$0xf]
        %v527 = vlaneseq
        %v528 = vshrl.u32 %v527, 7
        %v529 = vsub.s32 1, %v528
        %v530 = vrot.slane %v217, %v529
        %v539 = vunpack.c.l.b16 %v519
        %v540 = vunpack.c.l.b16 %v520
        %v541 = vunpack.c.l.b16 %v521
        %v542 = vunpack.c.l.b16 %v522
        %v543 = vunpack.c.l.b16 %v523
        %v544 = vunpack.c.l.b16 %v524
        %v545 = vunpack.c.l.b16 %v525
        %v546 = vunpack.c.l.b16 %v526
        %v547 = vpack.c.b16 %v540, %v539
        %v548 = vpack.c.b16 %v542, %v541
        %v549 = vpack.c.b16 %v544, %v543
        %v550 = vpack.c.b16 %v546, %v545
        %v556 = vsel %vm336, %v517, 0
        %558 = vmatprep.subr.bf16.mxu0 0
        %559 = vmatpush1.bf16.msra.mxu0 %v547
        %560 = vmatprep.subr.bf16.mxu0 0
        %561 = vmatpush1.bf16.msra.mxu0 %v548
        %562 = vmatprep.subr.bf16.mxu0 0
        %563 = vmatpush1.bf16.msra.mxu0 %v549
        %564 = vmatprep.subr.bf16.mxu0 0
        %565 = vmatpush1.bf16.msra.mxu0 %v550
        %566 = vmatprep.subr.bf16.mxu0 0
        %567 = vmatpush1.bf16.msra.mxu0 0
        %568 = vmatprep.subr.bf16.mxu0 0
        %569 = vmatpush1.bf16.msra.mxu0 0
        %570 = vmatprep.subr.bf16.mxu0 0
        %571 = vmatpush1.bf16.msra.mxu0 0
        %572 = vmatprep.subr.bf16.mxu0 0
        %573 = vmatpush1.bf16.msra.mxu0 0
        %574 = vmatprep.subr.bf16.mxu0 0
        %575 = vmatpush1.bf16.msra.mxu0 0
        %576 = vmatprep.subr.bf16.mxu0 0
        %577 = vmatpush1.bf16.msra.mxu0 0
        %578 = vmatprep.subr.bf16.mxu0 0
        %579 = vmatpush1.bf16.msra.mxu0 0
        %580 = vmatprep.subr.bf16.mxu0 0
        %581 = vmatpush1.bf16.msra.mxu0 0
        %582 = vmatprep.subr.bf16.mxu0 0
        %583 = vmatpush1.bf16.msra.mxu0 0
        %584 = vmatprep.subr.bf16.mxu0 0
        %585 = vmatpush1.bf16.msra.mxu0 0
        %586 = vmatprep.subr.bf16.mxu0 0
        %587 = vmatpush1.bf16.msra.mxu0 0
        %588 = vmatprep.subr.bf16.mxu0 0
        %589 = vmatpush1.bf16.msra.mxu0 0
        %590 = vmatprep.mubr.bf16.mxu0 0
        %591 = vmatmul.mubr.bf16.gmra.mrb[0].mxu0 %v556
        %v592 = vpop.f32.mrb[0].mxu0
        %v593 = vadd.f32 %v530, %v592
        %v594 = vpop.f32.mrb[0].mxu0
        %v595 = vpop.f32.mrb[0].mxu0
        %v596 = vpop.f32.mrb[0].mxu0
        %597 = vdwg.mxu0
        %598 = vst [vmem:[%s214] sm:$0xff] %v593
        %s599 = sand.u32 %s97, 1
        %s600 = scalar_lea.sflag [#allocation4], %s599
        %s601 = sand.u32 %s97, 1
        %s602 = smul.addr %s601, 8
        %s603 = scalar_lea.vmem [#allocation8], %s602
        // Predicated region
        $region45: #{improved_body_motion_forward.1} parent=31 // pred_check
          %p604 = pneg %p107
        $region46: #{improved_body_motion_forward.1} parent=31 // pred_check_branch
          %606 = sbr.rel (%p604) target = $region48
        $region47: #{improved_body_motion_forward.1} parent=31 // pred_region
          %s608 = ssub.s32 128, 128
          %609 = vsyncadd %s600, %s608
          %s610 = smul.addr %s21, 128
          %s611 = scalar_lea.hbm %s3, %s610
          %s613 = sshll.u32 %s603, 4
          %s614 = int_to_ptr.vmem [resolvable:$true] %s613
          %616 = dma.vmem_to_hbm [thread:$0]  %s614, 128, %s611, %s600
        $region48: #{improved_body_motion_forward.1} parent=31 // pred_fallthru
          _
      $region32: #{improved_body_motion_forward.1} parent=5 // pred_fallthru
        _
      %p617 = scmp.le.s32.totalorder 2, %s16
      // Predicated region
      $region49: #{improved_body_motion_forward.1} parent=5 // pred_check
        %p618 = pneg %p617
      $region50: #{improved_body_motion_forward.1} parent=5 // pred_check_branch
        %620 = sbr.rel (%p618) target = $region52
      $region51: #{improved_body_motion_forward.1} parent=5 // pred_region
        %s621 = ssub.s32 %s16, 2
        // Predicated region
        $region53: #{improved_body_motion_forward.1} parent=51 // pred_check
          %p622 = pneg %p113
        $region54: #{improved_body_motion_forward.1} parent=51 // pred_check_branch
          %624 = sbr.rel (%p622) target = $region56
        $region55: #{improved_body_motion_forward.1} parent=51 // pred_region
          %s625 = sand.u32 %s98, 1
          %s626 = scalar_lea.sflag [#allocation4], %s625
          %s627 = sand.u32 %s98, 1
          %s628 = smul.addr %s627, 8
          %s629 = scalar_lea.vmem [#allocation8], %s628
          %630 = dma.done %s626, 128
        $region56: #{improved_body_motion_forward.1} parent=51 // pred_fallthru
          _
      $region52: #{improved_body_motion_forward.1} parent=5 // pred_fallthru
        _
    $region6: #{improved_body_motion_forward.1} parent=1 // loop_footer
      %s20 = sadd.s32 1, %s16
    $region7: #{improved_body_motion_forward.1} parent=1 // loop_footer_branch
      %15 = sbr.rel target = $region3
    $region8: #{improved_body_motion_forward.1} parent=1 // loop_exit
      _
    %631 = vsyncpa [#allocation3], 1
    %s632 = scalar_lea.sflag [#allocation3], 1
    %633 = vsyncpa %s632, 1
    %634 = vsyncpa [#allocation6], 1
    %635 = vsyncpa [#allocation4], 1
    %s636 = scalar_lea.sflag [#allocation4], 1
    %637 = vsyncpa %s636, 1

</llo_original>
